<compile_context>
chip_gen: v6e
topology: v6e:2x2x1
jax: 0.10.0
libtpu: 0.0.40
codegen_flags: <defaults>
</compile_context>

<pallas_src>
import functools

import jax
import jax.numpy as jnp
from jax.experimental import pallas as pl
from jax.experimental.pallas import tpu as pltpu


def _round_up(x, m):
    return (x + m - 1) // m * m


def _cdiv(a, b):
    return -(-a // b)


def _batch_tiling(B, max_tile_b):
    """Pick (tile_b, padded_B).  Single step for small B; even step count
    (v7x two-TensorCore balance) when tiling is needed."""
    if B <= max_tile_b:
        tile_b = _round_up(B, 8)          # f32 state/out blocks: native (8,128)
        return tile_b, tile_b
    n = _cdiv(B, max_tile_b)
    if n % 2:
        n += 1                            # even grid -> both v7x TCs get equal work
    tile_b = _round_up(_cdiv(B, n), 16)   # large tiles: keep bf16 value tiles full
    n = _cdiv(B, tile_b)
    if n % 2:
        n += 1
    return tile_b, n * tile_b


def _actor_kernel(state_ref, w_ref, bs_ref, out_ref, *,
                  ds_p, f1_p, f2_p, a_p, dim_action):
    """One batch tile: 3 MXU matmuls + VPU relu/bias + EUP tanh + scale.

    state_ref : (TILE_B, ds_p)            f32   (batch tile of the state)
    w_ref     : (in_p, f1_p+f2_p+a_p)     bf16  (packed W1|W2|W3, zero padded)
    bs_ref    : (1, f1_p+f2_p+2*a_p)      f32   (packed b1|b2|b3|scale)
    out_ref   : (TILE_B, dim_action)      f32   (un-padded action output)
    All slab slice offsets are static and 128-lane aligned.
    """
    x = state_ref[...].astype(jnp.bfloat16)          # f32 -> bf16 on the VPU

    c1 = f1_p
    c2 = f1_p + f2_p

    # layer 1: relu(state @ W1 + b1)   (f32 accumulation on the MXU)
    h = jnp.dot(x, w_ref[0:ds_p, 0:f1_p], preferred_element_type=jnp.float32)
    h = jnp.maximum(h + bs_ref[0:1, 0:f1_p], 0.0)

    # layer 2: relu(h1 @ W2 + b2)
    h = jnp.dot(h.astype(jnp.bfloat16), w_ref[0:f1_p, c1:c2],
                preferred_element_type=jnp.float32)
    h = jnp.maximum(h + bs_ref[0:1, c1:c2], 0.0)

    # layer 3: action_scaling * tanh(h2 @ W3 + b3)
    a = jnp.dot(h.astype(jnp.bfloat16), w_ref[0:f2_p, c2:c2 + a_p],
                preferred_element_type=jnp.float32)
    # Narrow to the real action width BEFORE bias/tanh/scale: no wasted EUP
    # lanes and the store is un-padded.
    a = a[:, :dim_action] + bs_ref[0:1, c2:c2 + dim_action]
    scale = bs_ref[0:1, c2 + a_p:c2 + a_p + dim_action]
    out_ref[...] = scale * jnp.tanh(a)


def _actor_forward(state, w_slab, bs_slab, *, dim_state, f1, f2, dim_action,
                   ds_p, f1_p, f2_p, a_p, in_p, max_tile_b):
    B = state.shape[0]
    tile_b, b_p = _batch_tiling(B, max_tile_b)

    x = state.astype(jnp.float32)                     # module does state.float()
    pad_b = b_p - B
    pad_d = ds_p - dim_state
    if pad_b or pad_d:                                # static: skipped when aligned
        x = jnp.pad(x, ((0, pad_b), (0, pad_d)))

    n_w = f1_p + f2_p + a_p
    n_bs = f1_p + f2_p + 2 * a_p

    kernel = functools.partial(_actor_kernel, ds_p=ds_p, f1_p=f1_p, f2_p=f2_p,
                               a_p=a_p, dim_action=dim_action)

    # Real (unpadded) work, not padded work, so XLA schedules this sensibly.
    flops = 2 * B * (dim_state * f1 + f1 * f2 + f2 * dim_action)
    bytes_accessed = (B * dim_state * 4        # f32 state in
                      + in_p * n_w * 2         # bf16 weight slab
                      + n_bs * 4               # f32 bias/scale row
                      + B * dim_action * 4)    # f32 action out (un-padded)

    out = pl.pallas_call(
        kernel,
        out_shape=jax.ShapeDtypeStruct((b_p, dim_action), jnp.float32),
        grid=(b_p // tile_b,),
        in_specs=[
            pl.BlockSpec((tile_b, ds_p), lambda i: (i, 0)),   # batch-tiled state
            pl.BlockSpec((in_p, n_w), lambda i: (0, 0)),      # resident weights
            pl.BlockSpec((1, n_bs), lambda i: (0, 0)),        # resident bias/scale
        ],
        out_specs=pl.BlockSpec((tile_b, dim_action), lambda i: (i, 0)),
        compiler_params=pltpu.CompilerParams(
            dimension_semantics=("parallel",),     # megacore / 2-TC sharding on v7x
            vmem_limit_bytes=32 * 1024 * 1024,     # far above actual usage on v5e-v7x
        ),
        cost_estimate=pl.CostEstimate(
            flops=flops,
            transcendentals=B * dim_action,
            bytes_accessed=bytes_accessed),
    )(x, w_slab, bs_slab)

    if pad_b:
        out = out[:B]
    return out


def make_actor_forward(w1, b1, w2, b2, w3, b3, action_scaling, *,
                       max_tile_b=2048):
    """Pack parameters ONCE and return a jitted `forward(state)` closure.

    Weights are expected pre-transposed to [in, out]; biases are [out]-like.
    action_scaling may be a scalar, (dim_action,), or (1, dim_action).
    """
    dim_state, f1 = w1.shape
    f2 = w2.shape[1]
    dim_action = w3.shape[1]

    # Padded (lane/sublane-dense) dims for the packed slab.
    ds_p = _round_up(dim_state, 16)        # bf16 sublane tile for slab row slices
    f1_p = _round_up(f1, 128)
    f2_p = _round_up(f2, 128)
    a_p = _round_up(dim_action, 128)
    in_p = max(ds_p, f1_p, f2_p)           # rows of the packed weight slab

    # ---- one-time packing (eager; NOT in the per-call path) ----
    def pad_w(w, rows, cols):
        w = jnp.asarray(w, jnp.float32)
        return jnp.pad(w, ((0, rows - w.shape[0]), (0, cols - w.shape[1])))

    w_slab = jnp.concatenate(
        [pad_w(w1, in_p, f1_p), pad_w(w2, in_p, f2_p), pad_w(w3, in_p, a_p)],
        axis=1).astype(jnp.bfloat16)                   # (in_p, f1_p+f2_p+a_p)

    def pad_row(v, cols):
        v = jnp.asarray(v, jnp.float32).reshape(1, -1)
        return jnp.pad(v, ((0, 0), (0, cols - v.shape[1])))

    # Broadcast scaling to (1, dim_action) first so a scalar scaling is NOT
    # zero-padded into wrong per-action scales.
    scale_row = jnp.broadcast_to(
        jnp.asarray(action_scaling, jnp.float32).reshape(1, -1),
        (1, dim_action))

    bs_slab = jnp.concatenate(
        [pad_row(b1, f1_p), pad_row(b2, f2_p), pad_row(b3, a_p),
         pad_row(scale_row, a_p)], axis=1)             # (1, f1_p+f2_p+2*a_p)

    @jax.jit
    def forward(state):
        return _actor_forward(state, w_slab, bs_slab,
                              dim_state=dim_state, f1=f1, f2=f2,
                              dim_action=dim_action, ds_p=ds_p, f1_p=f1_p,
                              f2_p=f2_p, a_p=a_p, in_p=in_p,
                              max_tile_b=max_tile_b)

    return forward


def init_actor_params(key, dim_state, features, dim_action):
    """Deterministic init mirroring the PyTorch module's __init__.

    Weights are returned already transposed to [in, out] layout.
    PyTorch Linear default bias init is U(-1/sqrt(fan_in), 1/sqrt(fan_in));
    the module overrides only the weights of h1/h2 (same range) and h3
    (U(-0.003, 0.003)).
    """
    ks = jax.random.split(key, 6)
    f1, f2 = features

    lim1 = 1.0 / jnp.sqrt(jnp.float32(dim_state))
    w1 = jax.random.uniform(ks[0], (dim_state, f1), jnp.float32, -lim1, lim1)
    b1 = jax.random.uniform(ks[1], (1, f1), jnp.float32, -lim1, lim1)

    lim2 = 1.0 / jnp.sqrt(jnp.float32(f1))
    w2 = jax.random.uniform(ks[2], (f1, f2), jnp.float32, -lim2, lim2)
    b2 = jax.random.uniform(ks[3], (1, f2), jnp.float32, -lim2, lim2)

    lim3 = 1.0 / jnp.sqrt(jnp.float32(f2))
    w3 = jax.random.uniform(ks[4], (f2, dim_action), jnp.float32, -0.003, 0.003)
    b3 = jax.random.uniform(ks[5], (1, dim_action), jnp.float32, -lim3, lim3)

    return w1, b1, w2, b2, w3, b3


def reference_forward_bf16(state, w1, b1, w2, b2, w3, b3, action_scaling):
    """Pure-JAX reference using the same bf16-input / f32-accum numerics."""
    def lin(x, w, b):
        return jnp.dot(x.astype(jnp.bfloat16), w.astype(jnp.bfloat16),
                       preferred_element_type=jnp.float32) + b
    x = state.astype(jnp.float32)
    h1 = jnp.maximum(lin(x, w1, b1), 0.0)
    h2 = jnp.maximum(lin(h1, w2, b2), 0.0)
    return action_scaling * jnp.tanh(lin(h2, w3, b3))


def reference_forward_f32(state, w1, b1, w2, b2, w3, b3, action_scaling):
    """Pure-f32 reference matching the PyTorch module exactly."""
    x = state.astype(jnp.float32)
    h1 = jnp.maximum(x @ w1 + b1, 0.0)
    h2 = jnp.maximum(h1 @ w2 + b2, 0.0)
    return action_scaling * jnp.tanh(h2 @ w3 + b3)


if __name__ == "__main__":
    key = jax.random.PRNGKey(0)
    k_state, k_params, k_big = jax.random.split(key, 3)

    # Small shapes consistent with the module: dim_state, two hidden layers,
    # dim_action, plus a per-action scaling vector.
    batch = 8
    dim_state = 16
    features = (32, 32)
    dim_action = 4

    state = jax.random.normal(k_state, (batch, dim_state), jnp.float32)
    w1, b1, w2, b2, w3, b3 = init_actor_params(
        k_params, dim_state, features, dim_action)

    # --- per-action scaling vector (the usual case) ---
    action_scaling = jnp.array([[1.0, 2.0, 0.5, 1.5]], jnp.float32)
    forward = make_actor_forward(w1, b1, w2, b2, w3, b3, action_scaling)
    out = jax.block_until_ready(forward(state))
    assert out.shape == (batch, dim_action)

    ref_bf16 = reference_forward_bf16(
        state, w1, b1, w2, b2, w3, b3, action_scaling)
    ref_f32 = reference_forward_f32(
        state, w1, b1, w2, b2, w3, b3, action_scaling)
    assert jnp.allclose(out, ref_bf16, atol=1e-3, rtol=1e-3)
    assert jnp.allclose(out, ref_f32, atol=2e-2, rtol=2e-2)

    # --- scalar action scaling (previously a silent-zeroing hazard) ---
    scalar_scaling = 2.0
    forward_s = make_actor_forward(w1, b1, w2, b2, w3, b3, scalar_scaling)
    out_s = jax.block_until_ready(forward_s(state))
    ref_s = reference_forward_f32(state, w1, b1, w2, b2, w3, b3,
                                  jnp.float32(scalar_scaling))
    assert jnp.allclose(out_s, ref_s, atol=2e-2, rtol=2e-2)

    # --- multi-tile path: non-aligned batch, even grid, batch padding ---
    big_batch = 600
    big_state = jax.random.normal(k_big, (big_batch, dim_state), jnp.float32)
    forward_t = make_actor_forward(w1, b1, w2, b2, w3, b3, action_scaling,
                                   max_tile_b=256)
    out_t = jax.block_until_ready(forward_t(big_state))
    assert out_t.shape == (big_batch, dim_action)
    ref_t = reference_forward_bf16(
        big_state, w1, b1, w2, b2, w3, b3, action_scaling)
    assert jnp.allclose(out_t, ref_t, atol=1e-3, rtol=1e-3)

    print("KERNEL_OK")
</pallas_src>

<mosaic_0001>
module attributes {stable_mosaic.version = 11 : i64} {
  func.func @_actor_kernel(%arg0: i32, %arg1: memref<8x16xf32, #tpu.memory_space<vmem>>, %arg2: memref<128x384xbf16, #tpu.memory_space<vmem>>, %arg3: memref<1x512xf32, #tpu.memory_space<vmem>>, %arg4: memref<8x4xf32, #tpu.memory_space<vmem>>) attributes {dimension_semantics = [#tpu.dimension_semantics<parallel>], iteration_bounds = array<i64: 1>, scalar_prefetch = 0 : i64, scratch_operands = 0 : i64, tpu.core_type = #tpu.core_type<tc>, window_params = [{transform_indices = @transform_0, window_bounds = array<i64: 8, 16>}, {pipeline_mode = #tpu.pipeline_mode<synchronous>, transform_indices = @transform_1, window_bounds = array<i64: 128, 384>}, {pipeline_mode = #tpu.pipeline_mode<synchronous>, transform_indices = @transform_2, window_bounds = array<i64: 1, 512>}, {transform_indices = @transform_3, window_bounds = array<i64: 8, 4>}]} {
    %c0 = arith.constant 0 : index
    %c0_0 = arith.constant 0 : index
    %0 = vector.load %arg1[%c0, %c0_0] : memref<8x16xf32, #tpu.memory_space<vmem>>, vector<8x16xf32>
    %1 = arith.truncf %0 : vector<8x16xf32> to vector<8x16xbf16>
    %c0_1 = arith.constant 0 : index
    %c0_2 = arith.constant 0 : index
    %2 = vector.load %arg2[%c0_1, %c0_2] : memref<128x384xbf16, #tpu.memory_space<vmem>>, vector<16x128xbf16>
    %cst = arith.constant dense<0.000000e+00> : vector<8x128xf32>
    %3 = tpu.matmul %1, %2, %cst {dimension_numbers = #tpu.dot_dimension_numbers<[1], [0], [0], [1], [0, 0, 1, 1], [], []>} : vector<8x16xbf16>, vector<16x128xbf16>, vector<8x128xf32> -> vector<8x128xf32>
    %c0_3 = arith.constant 0 : index
    %c0_4 = arith.constant 0 : index
    %4 = vector.load %arg3[%c0_3, %c0_4] : memref<1x512xf32, #tpu.memory_space<vmem>>, vector<1x128xf32>
    %5 = vector.broadcast %4 : vector<1x128xf32> to vector<8x128xf32>
    %6 = arith.addf %3, %5 : vector<8x128xf32>
    %cst_5 = arith.constant 0.000000e+00 : f32
    %7 = vector.broadcast %cst_5 : f32 to vector<8x128xf32>
    %8 = arith.maximumf %6, %7 : vector<8x128xf32>
    %9 = arith.truncf %8 : vector<8x128xf32> to vector<8x128xbf16>
    %c0_6 = arith.constant 0 : index
    %c128 = arith.constant 128 : index
    %10 = vector.load %arg2[%c0_6, %c128] : memref<128x384xbf16, #tpu.memory_space<vmem>>, vector<128x128xbf16>
    %cst_7 = arith.constant dense<0.000000e+00> : vector<8x128xf32>
    %11 = tpu.matmul %9, %10, %cst_7 {dimension_numbers = #tpu.dot_dimension_numbers<[1], [0], [0], [1], [0, 0, 1, 1], [], []>} : vector<8x128xbf16>, vector<128x128xbf16>, vector<8x128xf32> -> vector<8x128xf32>
    %c0_8 = arith.constant 0 : index
    %c128_9 = arith.constant 128 : index
    %12 = vector.load %arg3[%c0_8, %c128_9] : memref<1x512xf32, #tpu.memory_space<vmem>>, vector<1x128xf32>
    %13 = vector.broadcast %12 : vector<1x128xf32> to vector<8x128xf32>
    %14 = arith.addf %11, %13 : vector<8x128xf32>
    %cst_10 = arith.constant 0.000000e+00 : f32
    %15 = vector.broadcast %cst_10 : f32 to vector<8x128xf32>
    %16 = arith.maximumf %14, %15 : vector<8x128xf32>
    %17 = arith.truncf %16 : vector<8x128xf32> to vector<8x128xbf16>
    %c0_11 = arith.constant 0 : index
    %c256 = arith.constant 256 : index
    %18 = vector.load %arg2[%c0_11, %c256] : memref<128x384xbf16, #tpu.memory_space<vmem>>, vector<128x128xbf16>
    %cst_12 = arith.constant dense<0.000000e+00> : vector<8x128xf32>
    %19 = tpu.matmul %17, %18, %cst_12 {dimension_numbers = #tpu.dot_dimension_numbers<[1], [0], [0], [1], [0, 0, 1, 1], [], []>} : vector<8x128xbf16>, vector<128x128xbf16>, vector<8x128xf32> -> vector<8x128xf32>
    %20 = vector.extract_strided_slice %19 {offsets = [0, 0], sizes = [8, 4], strides = [1, 1]} : vector<8x128xf32> to vector<8x4xf32>
    %c0_13 = arith.constant 0 : index
    %c256_14 = arith.constant 256 : index
    %21 = vector.load %arg3[%c0_13, %c256_14] : memref<1x512xf32, #tpu.memory_space<vmem>>, vector<1x4xf32>
    %22 = vector.broadcast %21 : vector<1x4xf32> to vector<8x4xf32>
    %23 = arith.addf %20, %22 : vector<8x4xf32>
    %c0_15 = arith.constant 0 : index
    %c384 = arith.constant 384 : index
    %24 = vector.load %arg3[%c0_15, %c384] : memref<1x512xf32, #tpu.memory_space<vmem>>, vector<1x4xf32>
    %25 = math.tanh %23 : vector<8x4xf32>
    %26 = vector.broadcast %24 : vector<1x4xf32> to vector<8x4xf32>
    %27 = arith.mulf %26, %25 : vector<8x4xf32>
    %c0_16 = arith.constant 0 : index
    %c0_17 = arith.constant 0 : index
    %28 = vector.load %arg4[%c0_16, %c0_17] : memref<8x4xf32, #tpu.memory_space<vmem>>, vector<8x4xf32>
    tpu.vector_store %arg4[%c0_16, %c0_17], %27 {strides = array<i32>} : memref<8x4xf32, #tpu.memory_space<vmem>>, vector<8x4xf32>,
    return
  }
  func.func @transform_0(%arg0: i32) -> (i32, i32) {
    %c0_i32 = arith.constant 0 : i32
    %c0_i32_0 = arith.constant 0 : i32
    return %arg0, %c0_i32 : i32, i32
  }
  func.func @transform_1(%arg0: i32) -> (i32, i32) {
    %c0_i32 = arith.constant 0 : i32
    %c0_i32_0 = arith.constant 0 : i32
    %c0_i32_1 = arith.constant 0 : i32
    return %c0_i32, %c0_i32_0 : i32, i32
  }
  func.func @transform_2(%arg0: i32) -> (i32, i32) {
    %c0_i32 = arith.constant 0 : i32
    %c0_i32_0 = arith.constant 0 : i32
    %c0_i32_1 = arith.constant 0 : i32
    return %c0_i32, %c0_i32_0 : i32, i32
  }
  func.func @transform_3(%arg0: i32) -> (i32, i32) {
    %c0_i32 = arith.constant 0 : i32
    %c0_i32_0 = arith.constant 0 : i32
    return %arg0, %c0_i32 : i32, i32
  }
}

</mosaic_0001>

<llo_original>
// kernel: forward.1
$region0: #{forward.1}
  #allocation0 [shape = 'u32[]', space=smem, size = 0x4, offset = 0x4, fixed_abs, tag = 'smem constant byte address 0x4 - core index']
  #allocation1 [shape = 'u32[144,128]{1,0:T(1,128)}', space=vmem, size = 0x12000, scoped, tag = 'internal scratch']
  %s0 = inlined_call_operand.hbm [shape: f32[8,16], index: 0, kind: input, shape index: {}]
  %s1 = inlined_call_operand.hbm [shape: bf16[128,384], index: 1, kind: input, shape index: {}]
  %s2 = inlined_call_operand.hbm [shape: f32[1,512], index: 2, kind: input, shape index: {}]
  %s3 = inlined_call_operand.vmem [shape: f32[8,4], index: 3, kind: output, shape index: {}]
  %s4 = sld [smem:[#allocation0]]
  $region34: #{forward.1} parent=0
    _
  %s6 = ssub.s32 1, %s4
  %s7 = scalar_select 0, %s6, %s4
  $region1: #{forward.1} parent=0
    #allocation2 [shape = 'u8[4096]{0}', space=vmem, size = 0x1000, scoped, tag = 'input window, operand 0, single buffered']
    #allocation3 [shape = 's32[1]{0}', space=sflag, size = 0x4, scoped, tag = 'scoped memory for forward.1']
    #allocation4 [shape = 'u8[98304]{0}', space=vmem, size = 0x18000, scoped, tag = 'input window, operand 1, single buffered']
    #allocation5 [shape = 's32[1]{0}', space=sflag, size = 0x4, scoped, tag = 'scoped memory for forward.1']
    #allocation6 [shape = 'u8[2048]{0}', space=vmem, size = 0x800, scoped, tag = 'input window, operand 2, single buffered']
    %8 = vsyncpa [#allocation3], 0
    %9 = vsyncpa [#allocation5], 0
    // Predicated region
    $region2: #{forward.1} parent=1 // pred_check
      _
    $region3: #{forward.1} parent=1 // pred_check_branch
      %11 = sbr.rel (0) target = $region5
    $region4: #{forward.1} parent=1 // pred_region
      %s13 = ssub.s32 128, 128
      %14 = vsyncadd [#allocation3], %s13
      %s16 = sshll.u32 [#allocation2], 4
      %s17 = int_to_ptr.vmem [resolvable:$true] %s16
      %19 = dma.hbm_to_vmem [thread:$0]  %s0, 128, %s17, [#allocation3]
    $region5: #{forward.1} parent=1 // pred_fallthru
      _
    // Predicated region
    $region6: #{forward.1} parent=1 // pred_check
      _
    $region7: #{forward.1} parent=1 // pred_check_branch
      %21 = sbr.rel (0) target = $region9
    $region8: #{forward.1} parent=1 // pred_region
      %s23 = ssub.s32 3072, 3072
      %24 = vsyncadd [#allocation5], %s23
      %s25 = sshll.u32 [#allocation4], 4
      %s26 = int_to_ptr.vmem [resolvable:$true] %s25
      %31 = dma.hbm_to_vmem [thread:$0]  %s1, 3072, %s26, [#allocation5], 192, 192, 12
    $region9: #{forward.1} parent=1 // pred_fallthru
      _
    // Predicated region
    $region10: #{forward.1} parent=1 // pred_check
      _
    $region11: #{forward.1} parent=1 // pred_check_branch
      %33 = sbr.rel (0) target = $region13
    $region12: #{forward.1} parent=1 // pred_region
      %s35 = ssub.s32 64, 64
      %36 = vsyncadd [#allocation5], %s35
      %s38 = sshll.u32 [#allocation6], 4
      %s39 = int_to_ptr.vmem [resolvable:$true] %s38
      %41 = dma.hbm_to_vmem [thread:$0]  %s2, 64, %s39, [#allocation5]
    $region13: #{forward.1} parent=1 // pred_fallthru
      _
    // Predicated region
    $region14: #{forward.1} parent=1 // pred_check
      _
    $region15: #{forward.1} parent=1 // pred_check_branch
      %43 = sbr.rel (0) target = $region17
    $region16: #{forward.1} parent=1 // pred_region
      %44 = dma.done [#allocation3], 128
    $region17: #{forward.1} parent=1 // pred_fallthru
      _
    // Predicated region
    $region18: #{forward.1} parent=1 // pred_check
      _
    $region19: #{forward.1} parent=1 // pred_check_branch
      %46 = sbr.rel (0) target = $region21
    $region20: #{forward.1} parent=1 // pred_region
      %47 = dma.done [#allocation5], 3072
    $region21: #{forward.1} parent=1 // pred_fallthru
      _
    // Predicated region
    $region22: #{forward.1} parent=1 // pred_check
      _
    $region23: #{forward.1} parent=1 // pred_check_branch
      %49 = sbr.rel (0) target = $region25
    $region24: #{forward.1} parent=1 // pred_region
      %50 = dma.done [#allocation5], 64
    $region25: #{forward.1} parent=1 // pred_fallthru
      _
    %v52 = vld [vmem:[#allocation2] sm:$0xff]
    %v53 = vpack.c.bf16 %v52, %v52
    %v54 = vld [vmem:[#allocation4] sm:$0xf]
    %v55 = vld [vmem:[#allocation4 + $0xc] sm:$0xf]
    %v56 = vld [vmem:[#allocation6] sm:$0x1]
    %v58 = vlaneseq
    %v59 = vshrl.u32 %v58, 7
    %v60 = vsub.s32 0, %v59
    %v61 = vrot.slane %v56, %v60
    %v65 = vunpack.c.l.b16 %v54
    %v66 = vunpack.c.l.b16 %v55
    %v67 = vpack.c.b16 %v66, %v65
    %vm69 = vcmask 130048
    %v71 = vsel %vm69, %v53, 0
    %73 = vmatprep.subr.bf16.mxu0 0
    %74 = vmatpush1.bf16.msra.mxu0 0
    %75 = vmatprep.subr.bf16.mxu0 0
    %76 = vmatpush1.bf16.msra.mxu0 0
    %77 = vmatprep.subr.bf16.mxu0 0
    %78 = vmatpush1.bf16.msra.mxu0 0
    %79 = vmatprep.subr.bf16.mxu0 0
    %80 = vmatpush1.bf16.msra.mxu0 0
    %81 = vmatprep.subr.bf16.mxu0 0
    %82 = vmatpush1.bf16.msra.mxu0 0
    %83 = vmatprep.subr.bf16.mxu0 0
    %84 = vmatpush1.bf16.msra.mxu0 0
    %85 = vmatprep.subr.bf16.mxu0 0
    %86 = vmatpush1.bf16.msra.mxu0 0
    %87 = vmatprep.subr.bf16.mxu0 0
    %88 = vmatpush1.bf16.msra.mxu0 %v67
    %89 = vmatprep.subr.bf16.mxu0 0
    %90 = vmatpush2.bf16.msra.mxu0 0
    %91 = vmatprep.subr.bf16.mxu0 0
    %92 = vmatpush2.bf16.msra.mxu0 0
    %93 = vmatprep.subr.bf16.mxu0 0
    %94 = vmatpush2.bf16.msra.mxu0 0
    %95 = vmatprep.subr.bf16.mxu0 0
    %96 = vmatpush2.bf16.msra.mxu0 0
    %97 = vmatprep.subr.bf16.mxu0 0
    %98 = vmatpush2.bf16.msra.mxu0 0
    %99 = vmatprep.subr.bf16.mxu0 0
    %100 = vmatpush2.bf16.msra.mxu0 0
    %101 = vmatprep.subr.bf16.mxu0 0
    %102 = vmatpush2.bf16.msra.mxu0 0
    %103 = vmatprep.subr.bf16.mxu0 0
    %104 = vmatpush2.bf16.msra.mxu0 0
    %105 = vmatprep.mubr.bf16.mxu0 0
    %106 = vmatmul.mubr.bf16.gmra.mxu0 %v71
    %v107 = vpop.f32.mrf.mxu0
    %v108 = vadd.f32 %v61, %v107
    %v109 = vpop.f32.mrf.mxu0
    %v110 = vpop.f32.mrf.mxu0
    %v111 = vpop.f32.mrf.mxu0
    %112 = vdwg.mxu0
    %v113 = vmax.f32 %v108, 0.0
    %v114 = vpack.c.bf16 %v113, %v113
    %v115 = vld [vmem:[#allocation4 + $0x4] sm:$0xf]
    %v116 = vld [vmem:[#allocation4 + $0x10] sm:$0xf]
    %v117 = vld [vmem:[#allocation4 + $0x1c] sm:$0xf]
    %v118 = vld [vmem:[#allocation4 + $0x28] sm:$0xf]
    %v119 = vld [vmem:[#allocation4 + $0x34] sm:$0xf]
    %v120 = vld [vmem:[#allocation4 + $0x40] sm:$0xf]
    %v121 = vld [vmem:[#allocation4 + $0x4c] sm:$0xf]
    %v122 = vld [vmem:[#allocation4 + $0x58] sm:$0xf]
    %v123 = vld [vmem:[#allocation4 + $0x64] sm:$0xf]
    %v124 = vld [vmem:[#allocation4 + $0x70] sm:$0xf]
    %v125 = vld [vmem:[#allocation4 + $0x7c] sm:$0xf]
    %v126 = vld [vmem:[#allocation4 + $0x88] sm:$0xf]
    %v127 = vld [vmem:[#allocation4 + $0x94] sm:$0xf]
    %v128 = vld [vmem:[#allocation4 + $0xa0] sm:$0xf]
    %v129 = vld [vmem:[#allocation4 + $0xac] sm:$0xf]
    %v130 = vld [vmem:[#allocation4 + $0xb8] sm:$0xf]
    %v131 = vld [vmem:[#allocation6 + $0x1] sm:$0x1]
    %v133 = vlaneseq
    %v134 = vshrl.u32 %v133, 7
    %v135 = vsub.s32 0, %v134
    %v136 = vrot.slane %v131, %v135
    %v154 = vunpack.c.l.b16 %v115
    %v155 = vunpack.c.l.b16 %v116
    %v156 = vunpack.c.l.b16 %v117
    %v157 = vunpack.c.l.b16 %v118
    %v158 = vunpack.c.l.b16 %v119
    %v159 = vunpack.c.l.b16 %v120
    %v160 = vunpack.c.l.b16 %v121
    %v161 = vunpack.c.l.b16 %v122
    %v162 = vunpack.c.l.b16 %v123
    %v163 = vunpack.c.l.b16 %v124
    %v164 = vunpack.c.l.b16 %v125
    %v165 = vunpack.c.l.b16 %v126
    %v166 = vunpack.c.l.b16 %v127
    %v167 = vunpack.c.l.b16 %v128
    %v168 = vunpack.c.l.b16 %v129
    %v169 = vunpack.c.l.b16 %v130
    %v170 = vpack.c.b16 %v155, %v154
    %v171 = vpack.c.b16 %v157, %v156
    %v172 = vpack.c.b16 %v159, %v158
    %v173 = vpack.c.b16 %v161, %v160
    %v174 = vpack.c.b16 %v163, %v162
    %v175 = vpack.c.b16 %v165, %v164
    %v176 = vpack.c.b16 %v167, %v166
    %v177 = vpack.c.b16 %v169, %v168
    %186 = vmatprep.subr.bf16.mxu0 0
    %187 = vmatpush1.bf16.msra.mxu0 %v177
    %188 = vmatprep.subr.bf16.mxu0 0
    %189 = vmatpush1.bf16.msra.mxu0 %v176
    %190 = vmatprep.subr.bf16.mxu0 0
    %191 = vmatpush1.bf16.msra.mxu0 %v175
    %192 = vmatprep.subr.bf16.mxu0 0
    %193 = vmatpush1.bf16.msra.mxu0 %v174
    %194 = vmatprep.subr.bf16.mxu0 0
    %195 = vmatpush1.bf16.msra.mxu0 %v173
    %196 = vmatprep.subr.bf16.mxu0 0
    %197 = vmatpush1.bf16.msra.mxu0 %v172
    %198 = vmatprep.subr.bf16.mxu0 0
    %199 = vmatpush1.bf16.msra.mxu0 %v171
    %200 = vmatprep.subr.bf16.mxu0 0
    %201 = vmatpush1.bf16.msra.mxu0 %v170
    %202 = vmatprep.subr.bf16.mxu0 0
    %203 = vmatpush2.bf16.msra.mxu0 0
    %204 = vmatprep.subr.bf16.mxu0 0
    %205 = vmatpush2.bf16.msra.mxu0 0
    %206 = vmatprep.subr.bf16.mxu0 0
    %207 = vmatpush2.bf16.msra.mxu0 0
    %208 = vmatprep.subr.bf16.mxu0 0
    %209 = vmatpush2.bf16.msra.mxu0 0
    %210 = vmatprep.subr.bf16.mxu0 0
    %211 = vmatpush2.bf16.msra.mxu0 0
    %212 = vmatprep.subr.bf16.mxu0 0
    %213 = vmatpush2.bf16.msra.mxu0 0
    %214 = vmatprep.subr.bf16.mxu0 0
    %215 = vmatpush2.bf16.msra.mxu0 0
    %216 = vmatprep.subr.bf16.mxu0 0
    %217 = vmatpush2.bf16.msra.mxu0 0
    %218 = vmatprep.mubr.bf16.mxu0 0
    %219 = vmatmul.mubr.bf16.gmra.mxu0 %v114
    %v220 = vpop.f32.mrf.mxu0
    %v221 = vadd.f32 %v136, %v220
    %v222 = vpop.f32.mrf.mxu0
    %v223 = vpop.f32.mrf.mxu0
    %v224 = vpop.f32.mrf.mxu0
    %225 = vdwg.mxu0
    %v226 = vmax.f32 %v221, 0.0
    %v227 = vpack.c.bf16 %v226, %v226
    %v228 = vld [vmem:[#allocation4 + $0x8] sm:$0xf]
    %v229 = vld [vmem:[#allocation4 + $0x14] sm:$0xf]
    %v230 = vld [vmem:[#allocation4 + $0x20] sm:$0xf]
    %v231 = vld [vmem:[#allocation4 + $0x2c] sm:$0xf]
    %v232 = vld [vmem:[#allocation4 + $0x38] sm:$0xf]
    %v233 = vld [vmem:[#allocation4 + $0x44] sm:$0xf]
    %v234 = vld [vmem:[#allocation4 + $0x50] sm:$0xf]
    %v235 = vld [vmem:[#allocation4 + $0x5c] sm:$0xf]
    %v236 = vld [vmem:[#allocation4 + $0x68] sm:$0xf]
    %v237 = vld [vmem:[#allocation4 + $0x74] sm:$0xf]
    %v238 = vld [vmem:[#allocation4 + $0x80] sm:$0xf]
    %v239 = vld [vmem:[#allocation4 + $0x8c] sm:$0xf]
    %v240 = vld [vmem:[#allocation4 + $0x98] sm:$0xf]
    %v241 = vld [vmem:[#allocation4 + $0xa4] sm:$0xf]
    %v242 = vld [vmem:[#allocation4 + $0xb0] sm:$0xf]
    %v243 = vld [vmem:[#allocation4 + $0xbc] sm:$0xf]
    %v260 = vunpack.c.l.b16 %v228
    %v261 = vunpack.c.l.b16 %v229
    %v262 = vunpack.c.l.b16 %v230
    %v263 = vunpack.c.l.b16 %v231
    %v264 = vunpack.c.l.b16 %v232
    %v265 = vunpack.c.l.b16 %v233
    %v266 = vunpack.c.l.b16 %v234
    %v267 = vunpack.c.l.b16 %v235
    %v268 = vunpack.c.l.b16 %v236
    %v269 = vunpack.c.l.b16 %v237
    %v270 = vunpack.c.l.b16 %v238
    %v271 = vunpack.c.l.b16 %v239
    %v272 = vunpack.c.l.b16 %v240
    %v273 = vunpack.c.l.b16 %v241
    %v274 = vunpack.c.l.b16 %v242
    %v275 = vunpack.c.l.b16 %v243
    %v276 = vpack.c.b16 %v261, %v260
    %v277 = vpack.c.b16 %v263, %v262
    %v278 = vpack.c.b16 %v265, %v264
    %v279 = vpack.c.b16 %v267, %v266
    %v280 = vpack.c.b16 %v269, %v268
    %v281 = vpack.c.b16 %v271, %v270
    %v282 = vpack.c.b16 %v273, %v272
    %v283 = vpack.c.b16 %v275, %v274
    %292 = vmatprep.subr.bf16.mxu0 0
    %293 = vmatpush1.bf16.msra.mxu0 %v283
    %294 = vmatprep.subr.bf16.mxu0 0
    %295 = vmatpush1.bf16.msra.mxu0 %v282
    %296 = vmatprep.subr.bf16.mxu0 0
    %297 = vmatpush1.bf16.msra.mxu0 %v281
    %298 = vmatprep.subr.bf16.mxu0 0
    %299 = vmatpush1.bf16.msra.mxu0 %v280
    %300 = vmatprep.subr.bf16.mxu0 0
    %301 = vmatpush1.bf16.msra.mxu0 %v279
    %302 = vmatprep.subr.bf16.mxu0 0
    %303 = vmatpush1.bf16.msra.mxu0 %v278
    %304 = vmatprep.subr.bf16.mxu0 0
    %305 = vmatpush1.bf16.msra.mxu0 %v277
    %306 = vmatprep.subr.bf16.mxu0 0
    %307 = vmatpush1.bf16.msra.mxu0 %v276
    %308 = vmatprep.subr.bf16.mxu0 0
    %309 = vmatpush2.bf16.msra.mxu0 0
    %310 = vmatprep.subr.bf16.mxu0 0
    %311 = vmatpush2.bf16.msra.mxu0 0
    %312 = vmatprep.subr.bf16.mxu0 0
    %313 = vmatpush2.bf16.msra.mxu0 0
    %314 = vmatprep.subr.bf16.mxu0 0
    %315 = vmatpush2.bf16.msra.mxu0 0
    %316 = vmatprep.subr.bf16.mxu0 0
    %317 = vmatpush2.bf16.msra.mxu0 0
    %318 = vmatprep.subr.bf16.mxu0 0
    %319 = vmatpush2.bf16.msra.mxu0 0
    %320 = vmatprep.subr.bf16.mxu0 0
    %321 = vmatpush2.bf16.msra.mxu0 0
    %322 = vmatprep.subr.bf16.mxu0 0
    %323 = vmatpush2.bf16.msra.mxu0 0
    %324 = vmatprep.mubr.bf16.mxu0 0
    %325 = vmatmul.mubr.bf16.gmra.mxu0 %v227
    %v326 = vpop.f32.mrf.mxu0
    %v327 = vadd.f32 0.0, %v326
    %v328 = vpop.f32.mrf.mxu0
    %v329 = vpop.f32.mrf.mxu0
    %v330 = vpop.f32.mrf.mxu0
    %331 = vdwg.mxu0
    %v332 = vld [vmem:[#allocation6 + $0x2] sm:$0x1]
    %v334 = vlaneseq
    %v335 = vshrl.u32 %v334, 7
    %v336 = vsub.s32 0, %v335
    %v337 = vrot.slane %v332, %v336
    %v339 = vadd.f32 %v327, %v337
    %v340 = vld [vmem:[#allocation6 + $0x3] sm:$0x1]
    %v341 = vtanh.pop %v339
    %v343 = vlaneseq
    %v344 = vshrl.u32 %v343, 7
    %v345 = vsub.s32 0, %v344
    %v346 = vrot.slane %v340, %v345
    %v348 = vmul.f32 %v346, %v341
    %vm349 = vcmask 31744
    %350 = vst.msk [vmem:[%s3] sm:$0xff] %vm349, %v348
    // Predicated region
    $region26: #{forward.1} parent=1 // pred_check
      _
    $region27: #{forward.1} parent=1 // pred_check_branch
      %352 = sbr.rel (0) target = $region29
    $region28: #{forward.1} parent=1 // pred_region
      _
    $region29: #{forward.1} parent=1 // pred_fallthru
      _
    // Predicated region
    $region30: #{forward.1} parent=1 // pred_check
      _
    $region31: #{forward.1} parent=1 // pred_check_branch
      %354 = sbr.rel (0) target = $region33
    $region32: #{forward.1} parent=1 // pred_region
      _
    $region33: #{forward.1} parent=1 // pred_fallthru
      _
    %355 = vsyncpa [#allocation3], 1
    %356 = vsyncpa [#allocation5], 1

</llo_original>
